<compile_context>
chip_gen: v5e
topology: v5e:2x2
jax: 0.10.0
libtpu: 0.0.40
codegen_flags: <defaults>
</compile_context>

<pallas_src>
import functools

import numpy as np

import jax
import jax.numpy as jnp
from jax.experimental import pallas as pl
from jax.experimental.pallas import tpu as pltpu


def _round_up(x, m):
    return (x + m - 1) // m * m


def _blockdiag_cov_kernel(bmin_ref, bmax_ref,      # scalar prefetch (SMEM)
                          brow_ref, bcol_ref,      # (tile, k_tile) B tiles
                          bid_r_ref, bid_c_ref,    # (tile,1) / (1,tile) block ids
                          d_ref,                   # (1, tile) diagonal stds
                          o_ref,                   # (tile, tile) output tile
                          acc_ref):                # (tile, tile) f32 scratch
    i = pl.program_id(0)
    j = pl.program_id(1)
    k = pl.program_id(2)
    nk = pl.num_programs(2)

    @pl.when(k == 0)
    def _():
        acc_ref[...] = jnp.zeros_like(acc_ref)

    # A tile can contribute only if some row block-id in tile i equals some
    # col block-id in tile j (block ids are nondecreasing along the axis).
    active = jnp.logical_and(bmin_ref[i] <= bmax_ref[j],
                             bmin_ref[j] <= bmax_ref[i])

    @pl.when(active)
    def _():
        # Gram contraction: contract axis 1 with axis 1 (B_row @ B_col^T)
        # without materializing a transpose; f32 MXU accumulation.
        acc_ref[...] += jax.lax.dot_general(
            brow_ref[...], bcol_ref[...],
            dimension_numbers=(((1,), (1,)), ((), ())),
            preferred_element_type=jnp.float32,
        )

    @pl.when(k == nk - 1)
    def _():
        tm, tn = acc_ref.shape
        # Zero cross-block entries (tiles straddling a block boundary) and the
        # skipped off-band tiles.
        same_block = bid_r_ref[...] == bid_c_ref[...]            # (tm, tn)
        cov = jnp.where(same_block, acc_ref[...], 0.0)
        # diag(d^2) lands only on the global diagonal (diagonal output tiles).
        row = jax.lax.broadcasted_iota(jnp.int32, (tm, 1), 0)
        col = jax.lax.broadcasted_iota(jnp.int32, (1, tn), 1)
        d = d_ref[...].astype(jnp.float32)                       # (1, tn)
        on_diag = jnp.logical_and(row == col, i == j)
        o_ref[...] = (cov + jnp.where(on_diag, d * d, 0.0)).astype(o_ref.dtype)


def blockdiag_cov(b_cat, d_row, bid_r, bid_c, bmin, bmax, *, tile, k_tile):
    """Full block-diagonal covariance (padded to N_pad) in ONE pallas_call."""
    n_pad, k_pad = b_cat.shape
    nt = n_pad // tile
    nk = k_pad // k_tile
    return pl.pallas_call(
        _blockdiag_cov_kernel,
        out_shape=jax.ShapeDtypeStruct((n_pad, n_pad), jnp.float32),
        grid_spec=pltpu.PrefetchScalarGridSpec(
            num_scalar_prefetch=2,
            grid=(nt, nt, nk),
            in_specs=[
                # row tile of B_cat (lhs of the Gram product)
                pl.BlockSpec((tile, k_tile), lambda i, j, k, *_: (i, k)),
                # col tile of B_cat (rhs, consumed transposed by the MXU)
                pl.BlockSpec((tile, k_tile), lambda i, j, k, *_: (j, k)),
                # block ids oriented along rows / cols of the output tile
                pl.BlockSpec((tile, 1), lambda i, j, k, *_: (i, 0)),
                pl.BlockSpec((1, tile), lambda i, j, k, *_: (0, j)),
                # d slice matching the output tile's columns
                pl.BlockSpec((1, tile), lambda i, j, k, *_: (0, j)),
            ],
            out_specs=pl.BlockSpec((tile, tile), lambda i, j, k, *_: (i, j)),
            scratch_shapes=[pltpu.VMEM((tile, tile), jnp.float32)],
        ),
        compiler_params=pltpu.CompilerParams(
            dimension_semantics=("parallel", "parallel", "arbitrary"),
        ),
    )(bmin, bmax, b_cat, b_cat, bid_r, bid_c, d_row)


@functools.partial(
    jax.jit, static_argnames=("n_sizes", "tile", "max_k_tile", "compute_dtype"))
def bl_forward(mu, B_list, d_list, n_sizes, tile=128, max_k_tile=2048,
               compute_dtype=jnp.float32):
    """Equivalent of BLmodel.forward(): returns (mu, block_diag(covs))."""
    n_sizes = tuple(int(n) for n in n_sizes)
    g_blocks = len(n_sizes)
    big_n = sum(n_sizes)
    k = B_list[0].shape[1]

    n_pad = _round_up(big_n, tile)             # lane-dense output tiles
    k_pad = _round_up(k, 128)                  # lane-dense B loads
    if k_pad > max_k_tile:                     # K reduction axis kicks in
        k_pad = _round_up(k, max_k_tile)
    k_tile = min(k_pad, max_k_tile)

    # Concatenated + zero-padded operands; padding rows/cols contribute exact
    # zeros to both the Gram product and diag(d^2).
    b_cat = jnp.concatenate([b.astype(jnp.float32) for b in B_list], axis=0)
    b_cat = jnp.pad(b_cat, ((0, n_pad - big_n), (0, k_pad - k)))
    b_cat = b_cat.astype(compute_dtype)        # bf16 fast path on v6e/v7x
    d_cat = jnp.concatenate([d.astype(jnp.float32) for d in d_list])
    d_row = jnp.pad(d_cat, (0, n_pad - big_n)).reshape(1, n_pad)

    # Static block-id metadata (n_sizes is static under jit -> constants).
    row_bid = np.full((n_pad,), g_blocks, dtype=np.int32)   # padding rows
    off = 0
    for g, n in enumerate(n_sizes):
        row_bid[off:off + n] = g
        off += n
    nt = n_pad // tile
    bmin = jnp.asarray(row_bid.reshape(nt, tile).min(axis=1))
    bmax = jnp.asarray(row_bid.reshape(nt, tile).max(axis=1))
    bid_r = jnp.asarray(row_bid.reshape(n_pad, 1))
    bid_c = jnp.asarray(row_bid.reshape(1, n_pad))

    cov_pad = blockdiag_cov(b_cat, d_row, bid_r, bid_c, bmin, bmax,
                            tile=tile, k_tile=k_tile)
    # Drop the (< tile) padded rows/cols; identity when big_n % tile == 0.
    return mu, cov_pad[:big_n, :big_n]


if __name__ == "__main__":
    HI = jax.lax.Precision.HIGHEST

    def reference(B_list, d_list):
        blocks = [jnp.dot(b, b.T, precision=HI) + jnp.diag(d * d)
                  for b, d in zip(B_list, d_list)]
        return jax.scipy.linalg.block_diag(*blocks)

    # --- Primary check: small shapes matching the module (3 blocks, K=8). ---
    n_sizes = (8, 16, 8)          # per-block dimensions -> N = 32
    K = 8
    key = jax.random.PRNGKey(0)
    keys = jax.random.split(key, 2 * len(n_sizes) + 1)
    B_list = [jax.random.normal(keys[i], (n, K), jnp.float32)
              for i, n in enumerate(n_sizes)]
    d_list = [jax.random.normal(keys[len(n_sizes) + i], (n,), jnp.float32)
              for i, n in enumerate(n_sizes)]
    mu = jax.random.normal(keys[-1], (sum(n_sizes),), jnp.float32)

    mu_out, cov = bl_forward(mu, B_list, d_list, n_sizes)
    jax.block_until_ready((mu_out, cov))

    ref_cov = reference(B_list, d_list)
    assert cov.shape == (sum(n_sizes), sum(n_sizes))
    assert jnp.allclose(cov, ref_cov, atol=1e-4, rtol=1e-4), "cov mismatch (f32)"
    assert jnp.allclose(mu_out, mu), "mu mismatch"

    # --- Multi-tile check: block boundaries inside tiles, off-band tile skip,
    #     diagonal placement across several 128-tiles. ------------------------
    n_sizes2 = (200, 60, 140)     # N = 400 -> N_pad = 512, 4x4 output tiles
    K2 = 24
    keys2 = jax.random.split(jax.random.PRNGKey(1), 2 * len(n_sizes2))
    B_list2 = [jax.random.normal(keys2[i], (n, K2), jnp.float32)
               for i, n in enumerate(n_sizes2)]
    d_list2 = [jax.random.normal(keys2[len(n_sizes2) + i], (n,), jnp.float32)
               for i, n in enumerate(n_sizes2)]
    mu2 = jnp.zeros((sum(n_sizes2),), jnp.float32)
    _, cov2 = bl_forward(mu2, B_list2, d_list2, n_sizes2)
    jax.block_until_ready(cov2)
    assert jnp.allclose(cov2, reference(B_list2, d_list2),
                        atol=1e-3, rtol=1e-3), "cov mismatch (multi-tile)"

    # --- bf16 operand fast path (v6e/v7x MXU), f32 accumulation. Compare
    #     against a reference built from the same bf16-rounded operands. ------
    _, cov_bf16 = bl_forward(mu, B_list, d_list, n_sizes,
                             compute_dtype=jnp.bfloat16)
    jax.block_until_ready(cov_bf16)
    B_rounded = [b.astype(jnp.bfloat16).astype(jnp.float32) for b in B_list]
    ref_bf16 = reference(B_rounded, d_list)
    assert jnp.allclose(cov_bf16, ref_bf16, atol=1e-4, rtol=1e-4), \
        "cov mismatch (bf16 path)"

    print("KERNEL_OK")
</pallas_src>

<mosaic_0001>
module attributes {stable_mosaic.version = 11 : i64} {
  func.func @_blockdiag_cov_kernel(%arg0: i32, %arg1: i32, %arg2: i32, %arg3: memref<1xi32, #tpu.memory_space<smem>>, %arg4: memref<1xi32, #tpu.memory_space<smem>>, %arg5: memref<128x128xf32, #tpu.memory_space<vmem>>, %arg6: memref<128x128xf32, #tpu.memory_space<vmem>>, %arg7: memref<128x1xi32, #tpu.memory_space<vmem>>, %arg8: memref<1x128xi32, #tpu.memory_space<vmem>>, %arg9: memref<1x128xf32, #tpu.memory_space<vmem>>, %arg10: memref<128x128xf32, #tpu.memory_space<vmem>>, %arg11: memref<128x128xf32, #tpu.memory_space<vmem>>) attributes {dimension_semantics = [#tpu.dimension_semantics<parallel>, #tpu.dimension_semantics<parallel>, #tpu.dimension_semantics<arbitrary>], iteration_bounds = array<i64: 1, 1, 1>, scalar_prefetch = 2 : i64, scratch_operands = 1 : i64, tpu.core_type = #tpu.core_type<tc>, window_params = [{transform_indices = @transform_0, window_bounds = array<i64: 128, 128>}, {transform_indices = @transform_1, window_bounds = array<i64: 128, 128>}, {transform_indices = @transform_2, window_bounds = array<i64: 128, 1>}, {transform_indices = @transform_3, window_bounds = array<i64: 1, 128>}, {transform_indices = @transform_4, window_bounds = array<i64: 1, 128>}, {transform_indices = @transform_5, window_bounds = array<i64: 128, 128>}]} {
    %c0_i32 = arith.constant 0 : i32
    %0 = arith.cmpi eq, %arg2, %c0_i32 : i32
    %1 = arith.extui %0 : i1 to i32
    %c0_i32_0 = arith.constant 0 : i32
    %2 = arith.cmpi ne, %1, %c0_i32_0 : i32
    scf.if %2 {
      %cst = arith.constant 0.000000e+00 : f32
      %19 = vector.broadcast %cst : f32 to vector<128x128xf32>
      %c0 = arith.constant 0 : index
      %c0_4 = arith.constant 0 : index
      %20 = vector.load %arg11[%c0, %c0_4] : memref<128x128xf32, #tpu.memory_space<vmem>>, vector<128x128xf32>
      tpu.vector_store %arg11[%c0, %c0_4], %19 {strides = array<i32>} : memref<128x128xf32, #tpu.memory_space<vmem>>, vector<128x128xf32>,
    } else {
    }
    %3 = arith.index_cast %arg0 : i32 to index
    %4 = memref.load %arg3[%3] : memref<1xi32, #tpu.memory_space<smem>>
    %5 = arith.index_cast %arg1 : i32 to index
    %6 = memref.load %arg4[%5] : memref<1xi32, #tpu.memory_space<smem>>
    %7 = arith.cmpi sle, %4, %6 : i32
    %8 = arith.index_cast %arg1 : i32 to index
    %9 = memref.load %arg3[%8] : memref<1xi32, #tpu.memory_space<smem>>
    %10 = arith.index_cast %arg0 : i32 to index
    %11 = memref.load %arg4[%10] : memref<1xi32, #tpu.memory_space<smem>>
    %12 = arith.cmpi sle, %9, %11 : i32
    %13 = arith.andi %7, %12 : i1
    %14 = arith.extui %13 : i1 to i32
    %c0_i32_1 = arith.constant 0 : i32
    %15 = arith.cmpi ne, %14, %c0_i32_1 : i32
    scf.if %15 {
      %c0 = arith.constant 0 : index
      %c0_4 = arith.constant 0 : index
      %19 = vector.load %arg11[%c0, %c0_4] : memref<128x128xf32, #tpu.memory_space<vmem>>, vector<128x128xf32>
      %c0_5 = arith.constant 0 : index
      %c0_6 = arith.constant 0 : index
      %20 = vector.load %arg5[%c0_5, %c0_6] : memref<128x128xf32, #tpu.memory_space<vmem>>, vector<128x128xf32>
      %c0_7 = arith.constant 0 : index
      %c0_8 = arith.constant 0 : index
      %21 = vector.load %arg6[%c0_7, %c0_8] : memref<128x128xf32, #tpu.memory_space<vmem>>, vector<128x128xf32>
      %cst = arith.constant dense<0.000000e+00> : vector<128x128xf32>
      %22 = tpu.matmul %20, %21, %cst {dimension_numbers = #tpu.dot_dimension_numbers<[1], [1], [0], [0], [0, 0, 1, 0], [], []>} : vector<128x128xf32>, vector<128x128xf32>, vector<128x128xf32> -> vector<128x128xf32>
      %23 = arith.addf %19, %22 : vector<128x128xf32>
      %c0_9 = arith.constant 0 : index
      %c0_10 = arith.constant 0 : index
      %24 = vector.load %arg11[%c0_9, %c0_10] : memref<128x128xf32, #tpu.memory_space<vmem>>, vector<128x128xf32>
      tpu.vector_store %arg11[%c0_9, %c0_10], %23 {strides = array<i32>} : memref<128x128xf32, #tpu.memory_space<vmem>>, vector<128x128xf32>,
    } else {
    }
    %c0_i32_2 = arith.constant 0 : i32
    %16 = arith.cmpi eq, %arg2, %c0_i32_2 : i32
    %17 = arith.extui %16 : i1 to i32
    %c0_i32_3 = arith.constant 0 : i32
    %18 = arith.cmpi ne, %17, %c0_i32_3 : i32
    scf.if %18 {
      %c0 = arith.constant 0 : index
      %c0_4 = arith.constant 0 : index
      %19 = vector.load %arg7[%c0, %c0_4] : memref<128x1xi32, #tpu.memory_space<vmem>>, vector<128x1xi32>
      %c0_5 = arith.constant 0 : index
      %c0_6 = arith.constant 0 : index
      %20 = vector.load %arg8[%c0_5, %c0_6] : memref<1x128xi32, #tpu.memory_space<vmem>>, vector<1x128xi32>
      %21 = vector.broadcast %19 : vector<128x1xi32> to vector<128x128xi32>
      %22 = vector.broadcast %20 : vector<1x128xi32> to vector<128x128xi32>
      %23 = arith.cmpi eq, %21, %22 : vector<128x128xi32>
      %c0_7 = arith.constant 0 : index
      %c0_8 = arith.constant 0 : index
      %24 = vector.load %arg11[%c0_7, %c0_8] : memref<128x128xf32, #tpu.memory_space<vmem>>, vector<128x128xf32>
      %cst = arith.constant 0.000000e+00 : f32
      %25 = vector.broadcast %cst : f32 to vector<128x128xf32>
      %26 = arith.select %23, %24, %25 : vector<128x128xi1>, vector<128x128xf32>
      %27 = tpu.iota {dimensions = array<i32: 0>} : vector<128x1xi32>
      %28 = tpu.iota {dimensions = array<i32: 1>} : vector<1x128xi32>
      %c0_9 = arith.constant 0 : index
      %c0_10 = arith.constant 0 : index
      %29 = vector.load %arg9[%c0_9, %c0_10] : memref<1x128xf32, #tpu.memory_space<vmem>>, vector<1x128xf32>
      %30 = vector.broadcast %27 : vector<128x1xi32> to vector<128x128xi32>
      %31 = vector.broadcast %28 : vector<1x128xi32> to vector<128x128xi32>
      %32 = arith.cmpi eq, %30, %31 : vector<128x128xi32>
      %33 = arith.cmpi eq, %arg0, %arg1 : i32
      %34 = vector.broadcast %33 : i1 to vector<128x128xi1>
      %35 = arith.andi %32, %34 : vector<128x128xi1>
      %36 = arith.mulf %29, %29 : vector<1x128xf32>
      %cst_11 = arith.constant 0.000000e+00 : f32
      %37 = vector.shape_cast %36 : vector<1x128xf32> to vector<1x128xf32>
      %38 = vector.broadcast %37 : vector<1x128xf32> to vector<128x128xf32>
      %39 = vector.broadcast %cst_11 : f32 to vector<128x128xf32>
      %40 = arith.select %35, %38, %39 : vector<128x128xi1>, vector<128x128xf32>
      %41 = arith.addf %26, %40 : vector<128x128xf32>
      %c0_12 = arith.constant 0 : index
      %c0_13 = arith.constant 0 : index
      %42 = vector.load %arg10[%c0_12, %c0_13] : memref<128x128xf32, #tpu.memory_space<vmem>>, vector<128x128xf32>
      tpu.vector_store %arg10[%c0_12, %c0_13], %41 {strides = array<i32>} : memref<128x128xf32, #tpu.memory_space<vmem>>, vector<128x128xf32>,
    } else {
    }
    return
  }
  func.func @transform_0(%arg0: i32, %arg1: i32, %arg2: i32, %arg3: memref<1xi32, #tpu.memory_space<smem>>, %arg4: memref<1xi32, #tpu.memory_space<smem>>) -> (i32, i32) {
    %c0_i32 = arith.constant 0 : i32
    return %arg0, %arg2 : i32, i32
  }
  func.func @transform_1(%arg0: i32, %arg1: i32, %arg2: i32, %arg3: memref<1xi32, #tpu.memory_space<smem>>, %arg4: memref<1xi32, #tpu.memory_space<smem>>) -> (i32, i32) {
    %c0_i32 = arith.constant 0 : i32
    return %arg1, %arg2 : i32, i32
  }
  func.func @transform_2(%arg0: i32, %arg1: i32, %arg2: i32, %arg3: memref<1xi32, #tpu.memory_space<smem>>, %arg4: memref<1xi32, #tpu.memory_space<smem>>) -> (i32, i32) {
    %c0_i32 = arith.constant 0 : i32
    %c0_i32_0 = arith.constant 0 : i32
    return %arg0, %c0_i32 : i32, i32
  }
  func.func @transform_3(%arg0: i32, %arg1: i32, %arg2: i32, %arg3: memref<1xi32, #tpu.memory_space<smem>>, %arg4: memref<1xi32, #tpu.memory_space<smem>>) -> (i32, i32) {
    %c0_i32 = arith.constant 0 : i32
    %c0_i32_0 = arith.constant 0 : i32
    return %c0_i32, %arg1 : i32, i32
  }
  func.func @transform_4(%arg0: i32, %arg1: i32, %arg2: i32, %arg3: memref<1xi32, #tpu.memory_space<smem>>, %arg4: memref<1xi32, #tpu.memory_space<smem>>) -> (i32, i32) {
    %c0_i32 = arith.constant 0 : i32
    %c0_i32_0 = arith.constant 0 : i32
    return %c0_i32, %arg1 : i32, i32
  }
  func.func @transform_5(%arg0: i32, %arg1: i32, %arg2: i32, %arg3: memref<1xi32, #tpu.memory_space<smem>>, %arg4: memref<1xi32, #tpu.memory_space<smem>>) -> (i32, i32) {
    %c0_i32 = arith.constant 0 : i32
    return %arg0, %arg1 : i32, i32
  }
}

</mosaic_0001>

<llo_original>
// kernel: bl_forward.1
$region0: #{bl_forward.1}
  #allocation0 [shape = 'u32[]', space=smem, size = 0x4, offset = 0x4, fixed_abs, tag = 'smem constant byte address 0x4 - core index']
  #allocation1 [shape = 'u32[72,128]{1,0:T(1,128)}', space=vmem, size = 0x9000, scoped, tag = 'internal scratch']
  #allocation2 [shape = 'f32[128,128]{1,0:T(8,128)}', space=vmem, size = 0x10000, scoped, tag = 'scratch operand']
  #allocation3 [shape = 's32[1]{0}', space=sflag, size = 0x4, scoped, tag = 'scoped memory for bl_forward.1']
  #allocation4 [shape = 's32[1]{0:T(128)S(6)}', space=smem, size = 0x200, scoped, tag = 'prefetched SMEM operand 0']
  #allocation5 [shape = 's32[1]{0:T(128)S(6)}', space=smem, size = 0x200, scoped, tag = 'prefetched SMEM operand 1']
  %s0 = inlined_call_operand.<no memory space> [shape: s32[1], index: 0, kind: input, shape index: {}]
  %s1 = inlined_call_operand.<no memory space> [shape: s32[1], index: 1, kind: input, shape index: {}]
  %s2 = inlined_call_operand.vmem [shape: f32[128,128], index: 2, kind: input, shape index: {}, may-alias: {2,3}]
  %s3 = inlined_call_operand.vmem [shape: f32[128,128], index: 3, kind: input, shape index: {}, may-alias: {2,3}]
  %s4 = inlined_call_operand.vmem [shape: s32[128,1], index: 4, kind: input, shape index: {}]
  %s5 = inlined_call_operand.vmem [shape: s32[1,128], index: 5, kind: input, shape index: {}]
  %s6 = inlined_call_operand.vmem [shape: f32[1,128], index: 6, kind: input, shape index: {}]
  %s7 = inlined_call_operand.vmem [shape: f32[128,128], index: 7, kind: output, shape index: {}]
  %s8 = sld [smem:[#allocation0]]
  $region42: #{bl_forward.1} parent=0
    _
  %s10 = ssub.s32 1, %s8
  %s11 = scalar_select 0, %s10, %s8
  %12 = sst [smem:[#allocation4]] %s0
  %13 = sst [smem:[#allocation5]] %s1
  // Predicated region
  $region2: #{bl_forward.1} parent=0 // pred_check
    _
  $region3: #{bl_forward.1} parent=0 // pred_check_branch
    %15 = sbr.rel (0) target = $region5
  $region4: #{bl_forward.1} parent=0 // pred_region
    _
  $region5: #{bl_forward.1} parent=0 // pred_fallthru
    _
  // Predicated region
  $region6: #{bl_forward.1} parent=0 // pred_check
    _
  $region7: #{bl_forward.1} parent=0 // pred_check_branch
    %17 = sbr.rel (0) target = $region9
  $region8: #{bl_forward.1} parent=0 // pred_region
    _
  $region9: #{bl_forward.1} parent=0 // pred_fallthru
    _
  // Predicated region
  $region10: #{bl_forward.1} parent=0 // pred_check
    _
  $region11: #{bl_forward.1} parent=0 // pred_check_branch
    %19 = sbr.rel (0) target = $region13
  $region12: #{bl_forward.1} parent=0 // pred_region
    _
  $region13: #{bl_forward.1} parent=0 // pred_fallthru
    _
  // Predicated region
  $region14: #{bl_forward.1} parent=0 // pred_check
    _
  $region15: #{bl_forward.1} parent=0 // pred_check_branch
    %21 = sbr.rel (0) target = $region17
  $region16: #{bl_forward.1} parent=0 // pred_region
    _
  $region17: #{bl_forward.1} parent=0 // pred_fallthru
    _
  // Predicated region
  $region18: #{bl_forward.1} parent=0 // pred_check
    _
  $region19: #{bl_forward.1} parent=0 // pred_check_branch
    %23 = sbr.rel (0) target = $region21
  $region20: #{bl_forward.1} parent=0 // pred_region
    _
  $region21: #{bl_forward.1} parent=0 // pred_fallthru
    _
  %p24 = scmp.eq.s32.totalorder 0, 0
  // Predicated region
  $region22: #{bl_forward.1} parent=0 // pred_check
    %p25 = pneg %p24
  $region23: #{bl_forward.1} parent=0 // pred_check_branch
    %27 = sbr.rel (%p25) target = $region25
  $region24: #{bl_forward.1} parent=0 // pred_region
    %28 = vst [vmem:[#allocation2] sm:$0xff] 0.0
    %29 = vst [vmem:[#allocation2 + $0x8] sm:$0xff] 0.0
    %30 = vst [vmem:[#allocation2 + $0x10] sm:$0xff] 0.0
    %31 = vst [vmem:[#allocation2 + $0x18] sm:$0xff] 0.0
    %32 = vst [vmem:[#allocation2 + $0x20] sm:$0xff] 0.0
    %33 = vst [vmem:[#allocation2 + $0x28] sm:$0xff] 0.0
    %34 = vst [vmem:[#allocation2 + $0x30] sm:$0xff] 0.0
    %35 = vst [vmem:[#allocation2 + $0x38] sm:$0xff] 0.0
    %36 = vst [vmem:[#allocation2 + $0x40] sm:$0xff] 0.0
    %37 = vst [vmem:[#allocation2 + $0x48] sm:$0xff] 0.0
    %38 = vst [vmem:[#allocation2 + $0x50] sm:$0xff] 0.0
    %39 = vst [vmem:[#allocation2 + $0x58] sm:$0xff] 0.0
    %40 = vst [vmem:[#allocation2 + $0x60] sm:$0xff] 0.0
    %41 = vst [vmem:[#allocation2 + $0x68] sm:$0xff] 0.0
    %42 = vst [vmem:[#allocation2 + $0x70] sm:$0xff] 0.0
    %43 = vst [vmem:[#allocation2 + $0x78] sm:$0xff] 0.0
  $region25: #{bl_forward.1} parent=0 // pred_fallthru
    _
  %s44 = sld [smem:[#allocation4]]
  %s45 = sld [smem:[#allocation5]]
  %p46 = scmp.le.s32.totalorder %s44, %s45
  %s47 = sld [smem:[#allocation4]]
  %s48 = sld [smem:[#allocation5]]
  %p49 = scmp.le.s32.totalorder %s47, %s48
  %p50 = pnand %p46, %p49
  %p51 = pneg %p50
  // Predicated region
  $region26: #{bl_forward.1} parent=0 // pred_check
    _
  $region27: #{bl_forward.1} parent=0 // pred_check_branch
    %53 = sbr.rel (%p50) target = $region29
  $region28: #{bl_forward.1} parent=0 // pred_region
    %v54 = vld [vmem:[#allocation2] sm:$0xff]
    %v55 = vld [vmem:[#allocation2 + $0x8] sm:$0xff]
    %v56 = vld [vmem:[#allocation2 + $0x10] sm:$0xff]
    %v57 = vld [vmem:[#allocation2 + $0x18] sm:$0xff]
    %v58 = vld [vmem:[#allocation2 + $0x20] sm:$0xff]
    %v59 = vld [vmem:[#allocation2 + $0x28] sm:$0xff]
    %v60 = vld [vmem:[#allocation2 + $0x30] sm:$0xff]
    %v61 = vld [vmem:[#allocation2 + $0x38] sm:$0xff]
    %v62 = vld [vmem:[#allocation2 + $0x40] sm:$0xff]
    %v63 = vld [vmem:[#allocation2 + $0x48] sm:$0xff]
    %v64 = vld [vmem:[#allocation2 + $0x50] sm:$0xff]
    %v65 = vld [vmem:[#allocation2 + $0x58] sm:$0xff]
    %v66 = vld [vmem:[#allocation2 + $0x60] sm:$0xff]
    %v67 = vld [vmem:[#allocation2 + $0x68] sm:$0xff]
    %v68 = vld [vmem:[#allocation2 + $0x70] sm:$0xff]
    %v69 = vld [vmem:[#allocation2 + $0x78] sm:$0xff]
    %v70 = vld [vmem:[%s2] sm:$0xff]
    %v71 = vld [vmem:[%s2 + $0x8] sm:$0xff]
    %v72 = vld [vmem:[%s2 + $0x10] sm:$0xff]
    %v73 = vld [vmem:[%s2 + $0x18] sm:$0xff]
    %v74 = vld [vmem:[%s2 + $0x20] sm:$0xff]
    %v75 = vld [vmem:[%s2 + $0x28] sm:$0xff]
    %v76 = vld [vmem:[%s2 + $0x30] sm:$0xff]
    %v77 = vld [vmem:[%s2 + $0x38] sm:$0xff]
    %v78 = vld [vmem:[%s2 + $0x40] sm:$0xff]
    %v79 = vld [vmem:[%s2 + $0x48] sm:$0xff]
    %v80 = vld [vmem:[%s2 + $0x50] sm:$0xff]
    %v81 = vld [vmem:[%s2 + $0x58] sm:$0xff]
    %v82 = vld [vmem:[%s2 + $0x60] sm:$0xff]
    %v83 = vld [vmem:[%s2 + $0x68] sm:$0xff]
    %v84 = vld [vmem:[%s2 + $0x70] sm:$0xff]
    %v85 = vld [vmem:[%s2 + $0x78] sm:$0xff]
    %v86 = vld [vmem:[%s3] sm:$0xff]
    %v87 = vld [vmem:[%s3 + $0x8] sm:$0xff]
    %v88 = vld [vmem:[%s3 + $0x10] sm:$0xff]
    %v89 = vld [vmem:[%s3 + $0x18] sm:$0xff]
    %v90 = vld [vmem:[%s3 + $0x20] sm:$0xff]
    %v91 = vld [vmem:[%s3 + $0x28] sm:$0xff]
    %v92 = vld [vmem:[%s3 + $0x30] sm:$0xff]
    %v93 = vld [vmem:[%s3 + $0x38] sm:$0xff]
    %v94 = vld [vmem:[%s3 + $0x40] sm:$0xff]
    %v95 = vld [vmem:[%s3 + $0x48] sm:$0xff]
    %v96 = vld [vmem:[%s3 + $0x50] sm:$0xff]
    %v97 = vld [vmem:[%s3 + $0x58] sm:$0xff]
    %v98 = vld [vmem:[%s3 + $0x60] sm:$0xff]
    %v99 = vld [vmem:[%s3 + $0x68] sm:$0xff]
    %v100 = vld [vmem:[%s3 + $0x70] sm:$0xff]
    %v101 = vld [vmem:[%s3 + $0x78] sm:$0xff]
    %102 = vmatpush.xpose.msra.mxu0 %v101
    %103 = vmatpush.xpose.msra.mxu0 %v100
    %104 = vmatpush.xpose.msra.mxu0 %v99
    %105 = vmatpush.xpose.msra.mxu0 %v98
    %106 = vmatpush.xpose.msra.mxu0 %v97
    %107 = vmatpush.xpose.msra.mxu0 %v96
    %108 = vmatpush.xpose.msra.mxu0 %v95
    %109 = vmatpush.xpose.msra.mxu0 %v94
    %110 = vmatpush.xpose.msra.mxu0 %v93
    %111 = vmatpush.xpose.msra.mxu0 %v92
    %112 = vmatpush.xpose.msra.mxu0 %v91
    %113 = vmatpush.xpose.msra.mxu0 %v90
    %114 = vmatpush.xpose.msra.mxu0 %v89
    %115 = vmatpush.xpose.msra.mxu0 %v88
    %116 = vmatpush.xpose.msra.mxu0 %v87
    %117 = vmatpush.xpose.msra.mxu0 %v86
    %118 = vmatmul.f32.gmra.mxu0 %v70
    %v119 = vpop.f32.mrf.mxu0
    %v120 = vadd.f32 0.0, %v119
    %121 = vmatmul.f32.gmra.mxu0 %v71
    %v122 = vpop.f32.mrf.mxu0
    %v123 = vadd.f32 0.0, %v122
    %124 = vmatmul.f32.gmra.mxu0 %v72
    %v125 = vpop.f32.mrf.mxu0
    %v126 = vadd.f32 0.0, %v125
    %127 = vmatmul.f32.gmra.mxu0 %v73
    %v128 = vpop.f32.mrf.mxu0
    %v129 = vadd.f32 0.0, %v128
    %130 = vmatmul.f32.gmra.mxu0 %v74
    %v131 = vpop.f32.mrf.mxu0
    %v132 = vadd.f32 0.0, %v131
    %133 = vmatmul.f32.gmra.mxu0 %v75
    %v134 = vpop.f32.mrf.mxu0
    %v135 = vadd.f32 0.0, %v134
    %136 = vmatmul.f32.gmra.mxu0 %v76
    %v137 = vpop.f32.mrf.mxu0
    %v138 = vadd.f32 0.0, %v137
    %139 = vmatmul.f32.gmra.mxu0 %v77
    %v140 = vpop.f32.mrf.mxu0
    %v141 = vadd.f32 0.0, %v140
    %142 = vmatmul.f32.gmra.mxu0 %v78
    %v143 = vpop.f32.mrf.mxu0
    %v144 = vadd.f32 0.0, %v143
    %145 = vmatmul.f32.gmra.mxu0 %v79
    %v146 = vpop.f32.mrf.mxu0
    %v147 = vadd.f32 0.0, %v146
    %148 = vmatmul.f32.gmra.mxu0 %v80
    %v149 = vpop.f32.mrf.mxu0
    %v150 = vadd.f32 0.0, %v149
    %151 = vmatmul.f32.gmra.mxu0 %v81
    %v152 = vpop.f32.mrf.mxu0
    %v153 = vadd.f32 0.0, %v152
    %154 = vmatmul.f32.gmra.mxu0 %v82
    %v155 = vpop.f32.mrf.mxu0
    %v156 = vadd.f32 0.0, %v155
    %157 = vmatmul.f32.gmra.mxu0 %v83
    %v158 = vpop.f32.mrf.mxu0
    %v159 = vadd.f32 0.0, %v158
    %160 = vmatmul.f32.gmra.mxu0 %v84
    %v161 = vpop.f32.mrf.mxu0
    %v162 = vadd.f32 0.0, %v161
    %163 = vmatmul.f32.gmra.mxu0 %v85
    %v164 = vpop.f32.mrf.mxu0
    %v165 = vadd.f32 0.0, %v164
    %166 = vdwg.mxu0
    %v167 = vadd.f32 %v54, %v120
    %v168 = vadd.f32 %v55, %v123
    %v169 = vadd.f32 %v56, %v126
    %v170 = vadd.f32 %v57, %v129
    %v171 = vadd.f32 %v58, %v132
    %v172 = vadd.f32 %v59, %v135
    %v173 = vadd.f32 %v60, %v138
    %v174 = vadd.f32 %v61, %v141
    %v175 = vadd.f32 %v62, %v144
    %v176 = vadd.f32 %v63, %v147
    %v177 = vadd.f32 %v64, %v150
    %v178 = vadd.f32 %v65, %v153
    %v179 = vadd.f32 %v66, %v156
    %v180 = vadd.f32 %v67, %v159
    %v181 = vadd.f32 %v68, %v162
    %v182 = vadd.f32 %v69, %v165
    %183 = vst [vmem:[#allocation2] sm:$0xff] %v167
    %184 = vst [vmem:[#allocation2 + $0x8] sm:$0xff] %v168
    %185 = vst [vmem:[#allocation2 + $0x10] sm:$0xff] %v169
    %186 = vst [vmem:[#allocation2 + $0x18] sm:$0xff] %v170
    %187 = vst [vmem:[#allocation2 + $0x20] sm:$0xff] %v171
    %188 = vst [vmem:[#allocation2 + $0x28] sm:$0xff] %v172
    %189 = vst [vmem:[#allocation2 + $0x30] sm:$0xff] %v173
    %190 = vst [vmem:[#allocation2 + $0x38] sm:$0xff] %v174
    %191 = vst [vmem:[#allocation2 + $0x40] sm:$0xff] %v175
    %192 = vst [vmem:[#allocation2 + $0x48] sm:$0xff] %v176
    %193 = vst [vmem:[#allocation2 + $0x50] sm:$0xff] %v177
    %194 = vst [vmem:[#allocation2 + $0x58] sm:$0xff] %v178
    %195 = vst [vmem:[#allocation2 + $0x60] sm:$0xff] %v179
    %196 = vst [vmem:[#allocation2 + $0x68] sm:$0xff] %v180
    %197 = vst [vmem:[#allocation2 + $0x70] sm:$0xff] %v181
    %198 = vst [vmem:[#allocation2 + $0x78] sm:$0xff] %v182
  $region29: #{bl_forward.1} parent=0 // pred_fallthru
    _
  // Predicated region
  $region30: #{bl_forward.1} parent=0 // pred_check
    %p199 = pneg %p24
  $region31: #{bl_forward.1} parent=0 // pred_check_branch
    %201 = sbr.rel (%p199) target = $region33
  $region32: #{bl_forward.1} parent=0 // pred_region
    %v202 = vld [vmem:[%s4] sm:$0xff]
    %v203 = vld [vmem:[%s4 + $0x8] sm:$0xff]
    %v204 = vld [vmem:[%s4 + $0x10] sm:$0xff]
    %v205 = vld [vmem:[%s4 + $0x18] sm:$0xff]
    %v206 = vld [vmem:[%s4 + $0x20] sm:$0xff]
    %v207 = vld [vmem:[%s4 + $0x28] sm:$0xff]
    %v208 = vld [vmem:[%s4 + $0x30] sm:$0xff]
    %v209 = vld [vmem:[%s4 + $0x38] sm:$0xff]
    %v210 = vld [vmem:[%s4 + $0x40] sm:$0xff]
    %v211 = vld [vmem:[%s4 + $0x48] sm:$0xff]
    %v212 = vld [vmem:[%s4 + $0x50] sm:$0xff]
    %v213 = vld [vmem:[%s4 + $0x58] sm:$0xff]
    %v214 = vld [vmem:[%s4 + $0x60] sm:$0xff]
    %v215 = vld [vmem:[%s4 + $0x68] sm:$0xff]
    %v216 = vld [vmem:[%s4 + $0x70] sm:$0xff]
    %v217 = vld [vmem:[%s4 + $0x78] sm:$0xff]
    %v218 = vld [vmem:[%s5] sm:$0x1]
    %219 = vset.pattern.permute.xlu0 0
    %220 = vperm.xlu0 %219, %v202
    %v221 = vpop.permute.xlu0 %220
    %222 = vset.pattern.permute.xlu0 0
    %223 = vperm.xlu0 %222, %v203
    %v224 = vpop.permute.xlu0 %223
    %225 = vset.pattern.permute.xlu0 0
    %226 = vperm.xlu0 %225, %v204
    %v227 = vpop.permute.xlu0 %226
    %228 = vset.pattern.permute.xlu0 0
    %229 = vperm.xlu0 %228, %v205
    %v230 = vpop.permute.xlu0 %229
    %231 = vset.pattern.permute.xlu0 0
    %232 = vperm.xlu0 %231, %v206
    %v233 = vpop.permute.xlu0 %232
    %234 = vset.pattern.permute.xlu0 0
    %235 = vperm.xlu0 %234, %v207
    %v236 = vpop.permute.xlu0 %235
    %237 = vset.pattern.permute.xlu0 0
    %238 = vperm.xlu0 %237, %v208
    %v239 = vpop.permute.xlu0 %238
    %240 = vset.pattern.permute.xlu0 0
    %241 = vperm.xlu0 %240, %v209
    %v242 = vpop.permute.xlu0 %241
    %243 = vset.pattern.permute.xlu0 0
    %244 = vperm.xlu0 %243, %v210
    %v245 = vpop.permute.xlu0 %244
    %246 = vset.pattern.permute.xlu0 0
    %247 = vperm.xlu0 %246, %v211
    %v248 = vpop.permute.xlu0 %247
    %249 = vset.pattern.permute.xlu0 0
    %250 = vperm.xlu0 %249, %v212
    %v251 = vpop.permute.xlu0 %250
    %252 = vset.pattern.permute.xlu0 0
    %253 = vperm.xlu0 %252, %v213
    %v254 = vpop.permute.xlu0 %253
    %255 = vset.pattern.permute.xlu0 0
    %256 = vperm.xlu0 %255, %v214
    %v257 = vpop.permute.xlu0 %256
    %258 = vset.pattern.permute.xlu0 0
    %259 = vperm.xlu0 %258, %v215
    %v260 = vpop.permute.xlu0 %259
    %261 = vset.pattern.permute.xlu0 0
    %262 = vperm.xlu0 %261, %v216
    %v263 = vpop.permute.xlu0 %262
    %264 = vset.pattern.permute.xlu0 0
    %265 = vperm.xlu0 %264, %v217
    %v266 = vpop.permute.xlu0 %265
    %v267 = vperm.slane %v218, 0
    %vm268 = vcmp.eq.s32.totalorder %v221, %v267
    %vm269 = vcmp.eq.s32.totalorder %v224, %v267
    %vm270 = vcmp.eq.s32.totalorder %v227, %v267
    %vm271 = vcmp.eq.s32.totalorder %v230, %v267
    %vm272 = vcmp.eq.s32.totalorder %v233, %v267
    %vm273 = vcmp.eq.s32.totalorder %v236, %v267
    %vm274 = vcmp.eq.s32.totalorder %v239, %v267
    %vm275 = vcmp.eq.s32.totalorder %v242, %v267
    %vm276 = vcmp.eq.s32.totalorder %v245, %v267
    %vm277 = vcmp.eq.s32.totalorder %v248, %v267
    %vm278 = vcmp.eq.s32.totalorder %v251, %v267
    %vm279 = vcmp.eq.s32.totalorder %v254, %v267
    %vm280 = vcmp.eq.s32.totalorder %v257, %v267
    %vm281 = vcmp.eq.s32.totalorder %v260, %v267
    %vm282 = vcmp.eq.s32.totalorder %v263, %v267
    %vm283 = vcmp.eq.s32.totalorder %v266, %v267
    %v284 = vld [vmem:[#allocation2] sm:$0xff]
    %v285 = vld [vmem:[#allocation2 + $0x8] sm:$0xff]
    %v286 = vld [vmem:[#allocation2 + $0x10] sm:$0xff]
    %v287 = vld [vmem:[#allocation2 + $0x18] sm:$0xff]
    %v288 = vld [vmem:[#allocation2 + $0x20] sm:$0xff]
    %v289 = vld [vmem:[#allocation2 + $0x28] sm:$0xff]
    %v290 = vld [vmem:[#allocation2 + $0x30] sm:$0xff]
    %v291 = vld [vmem:[#allocation2 + $0x38] sm:$0xff]
    %v292 = vld [vmem:[#allocation2 + $0x40] sm:$0xff]
    %v293 = vld [vmem:[#allocation2 + $0x48] sm:$0xff]
    %v294 = vld [vmem:[#allocation2 + $0x50] sm:$0xff]
    %v295 = vld [vmem:[#allocation2 + $0x58] sm:$0xff]
    %v296 = vld [vmem:[#allocation2 + $0x60] sm:$0xff]
    %v297 = vld [vmem:[#allocation2 + $0x68] sm:$0xff]
    %v298 = vld [vmem:[#allocation2 + $0x70] sm:$0xff]
    %v299 = vld [vmem:[#allocation2 + $0x78] sm:$0xff]
    %v300 = vsel %vm268, %v284, 0.0
    %v301 = vsel %vm269, %v285, 0.0
    %v302 = vsel %vm270, %v286, 0.0
    %v303 = vsel %vm271, %v287, 0.0
    %v304 = vsel %vm272, %v288, 0.0
    %v305 = vsel %vm273, %v289, 0.0
    %v306 = vsel %vm274, %v290, 0.0
    %v307 = vsel %vm275, %v291, 0.0
    %v308 = vsel %vm276, %v292, 0.0
    %v309 = vsel %vm277, %v293, 0.0
    %v310 = vsel %vm278, %v294, 0.0
    %v311 = vsel %vm279, %v295, 0.0
    %v312 = vsel %vm280, %v296, 0.0
    %v313 = vsel %vm281, %v297, 0.0
    %v314 = vsel %vm282, %v298, 0.0
    %v315 = vsel %vm283, %v299, 0.0
    %v316 = vlaneseq
    %v317 = vshrl.u32 %v316, 7
    %v318 = vadd.s32 %v317, 8
    %v319 = vadd.s32 %v317, 16
    %v320 = vadd.s32 %v317, 24
    %v321 = vadd.s32 %v317, 32
    %v322 = vadd.s32 %v317, 40
    %v323 = vadd.s32 %v317, 48
    %v324 = vadd.s32 %v317, 56
    %v325 = vadd.s32 %v317, 64
    %v326 = vadd.s32 %v317, 72
    %v327 = vadd.s32 %v317, 80
    %v328 = vadd.s32 %v317, 88
    %v329 = vadd.s32 %v317, 96
    %v330 = vadd.s32 %v317, 104
    %v331 = vadd.s32 %v317, 112
    %v332 = vadd.s32 %v317, 120
    %v333 = vlaneseq
    %v334 = vand.u32 %v333, 127
    %v335 = vld [vmem:[%s6] sm:$0x1]
    %vm336 = vcmp.eq.s32.totalorder %v317, %v334
    %vm337 = vcmp.eq.s32.totalorder %v318, %v334
    %vm338 = vcmp.eq.s32.totalorder %v319, %v334
    %vm339 = vcmp.eq.s32.totalorder %v320, %v334
    %vm340 = vcmp.eq.s32.totalorder %v321, %v334
    %vm341 = vcmp.eq.s32.totalorder %v322, %v334
    %vm342 = vcmp.eq.s32.totalorder %v323, %v334
    %vm343 = vcmp.eq.s32.totalorder %v324, %v334
    %vm344 = vcmp.eq.s32.totalorder %v325, %v334
    %vm345 = vcmp.eq.s32.totalorder %v326, %v334
    %vm346 = vcmp.eq.s32.totalorder %v327, %v334
    %vm347 = vcmp.eq.s32.totalorder %v328, %v334
    %vm348 = vcmp.eq.s32.totalorder %v329, %v334
    %vm349 = vcmp.eq.s32.totalorder %v330, %v334
    %vm350 = vcmp.eq.s32.totalorder %v331, %v334
    %vm351 = vcmp.eq.s32.totalorder %v332, %v334
    %p352 = scmp.eq.s32.totalorder 0, 0
    %s353 = scalar_select %p352, 1, 0
    %v354 = vstv %s353
    %vm355 = vcmp.eq.s32.totalorder %v354, 1
    %vm356 = vmand %vm336, %vm355
    %vm357 = vmand %vm337, %vm355
    %vm358 = vmand %vm338, %vm355
    %vm359 = vmand %vm339, %vm355
    %vm360 = vmand %vm340, %vm355
    %vm361 = vmand %vm341, %vm355
    %vm362 = vmand %vm342, %vm355
    %vm363 = vmand %vm343, %vm355
    %vm364 = vmand %vm344, %vm355
    %vm365 = vmand %vm345, %vm355
    %vm366 = vmand %vm346, %vm355
    %vm367 = vmand %vm347, %vm355
    %vm368 = vmand %vm348, %vm355
    %vm369 = vmand %vm349, %vm355
    %vm370 = vmand %vm350, %vm355
    %vm371 = vmand %vm351, %vm355
    %v372 = vmul.f32 %v335, %v335
    %v374 = vperm.slane %v372, 0
    %v376 = vsel %vm356, %v374, 0.0
    %v377 = vsel %vm357, %v374, 0.0
    %v378 = vsel %vm358, %v374, 0.0
    %v379 = vsel %vm359, %v374, 0.0
    %v380 = vsel %vm360, %v374, 0.0
    %v381 = vsel %vm361, %v374, 0.0
    %v382 = vsel %vm362, %v374, 0.0
    %v383 = vsel %vm363, %v374, 0.0
    %v384 = vsel %vm364, %v374, 0.0
    %v385 = vsel %vm365, %v374, 0.0
    %v386 = vsel %vm366, %v374, 0.0
    %v387 = vsel %vm367, %v374, 0.0
    %v388 = vsel %vm368, %v374, 0.0
    %v389 = vsel %vm369, %v374, 0.0
    %v390 = vsel %vm370, %v374, 0.0
    %v391 = vsel %vm371, %v374, 0.0
    %v392 = vadd.f32 %v300, %v376
    %v393 = vadd.f32 %v301, %v377
    %v394 = vadd.f32 %v302, %v378
    %v395 = vadd.f32 %v303, %v379
    %v396 = vadd.f32 %v304, %v380
    %v397 = vadd.f32 %v305, %v381
    %v398 = vadd.f32 %v306, %v382
    %v399 = vadd.f32 %v307, %v383
    %v400 = vadd.f32 %v308, %v384
    %v401 = vadd.f32 %v309, %v385
    %v402 = vadd.f32 %v310, %v386
    %v403 = vadd.f32 %v311, %v387
    %v404 = vadd.f32 %v312, %v388
    %v405 = vadd.f32 %v313, %v389
    %v406 = vadd.f32 %v314, %v390
    %v407 = vadd.f32 %v315, %v391
    %408 = vst [vmem:[%s7] sm:$0xff] %v392
    %409 = vst [vmem:[%s7 + $0x8] sm:$0xff] %v393
    %410 = vst [vmem:[%s7 + $0x10] sm:$0xff] %v394
    %411 = vst [vmem:[%s7 + $0x18] sm:$0xff] %v395
    %412 = vst [vmem:[%s7 + $0x20] sm:$0xff] %v396
    %413 = vst [vmem:[%s7 + $0x28] sm:$0xff] %v397
    %414 = vst [vmem:[%s7 + $0x30] sm:$0xff] %v398
    %415 = vst [vmem:[%s7 + $0x38] sm:$0xff] %v399
    %416 = vst [vmem:[%s7 + $0x40] sm:$0xff] %v400
    %417 = vst [vmem:[%s7 + $0x48] sm:$0xff] %v401
    %418 = vst [vmem:[%s7 + $0x50] sm:$0xff] %v402
    %419 = vst [vmem:[%s7 + $0x58] sm:$0xff] %v403
    %420 = vst [vmem:[%s7 + $0x60] sm:$0xff] %v404
    %421 = vst [vmem:[%s7 + $0x68] sm:$0xff] %v405
    %422 = vst [vmem:[%s7 + $0x70] sm:$0xff] %v406
    %423 = vst [vmem:[%s7 + $0x78] sm:$0xff] %v407
  $region33: #{bl_forward.1} parent=0 // pred_fallthru
    _
  // Predicated region
  $region34: #{bl_forward.1} parent=0 // pred_check
    _
  $region35: #{bl_forward.1} parent=0 // pred_check_branch
    %425 = sbr.rel (0) target = $region37
  $region36: #{bl_forward.1} parent=0 // pred_region
    _
  $region37: #{bl_forward.1} parent=0 // pred_fallthru
    _
  // Predicated region
  $region38: #{bl_forward.1} parent=0 // pred_check
    _
  $region39: #{bl_forward.1} parent=0 // pred_check_branch
    %427 = sbr.rel (0) target = $region41
  $region40: #{bl_forward.1} parent=0 // pred_region
    _
  $region41: #{bl_forward.1} parent=0 // pred_fallthru
    _

</llo_original>
